<compile_context>
chip_gen: v5e
topology: v5e:2x2
jax: 0.10.0
libtpu: 0.0.40
codegen_flags: <defaults>
</compile_context>

<pallas_src>
import jax
import jax.numpy as jnp
from jax.experimental import pallas as pl
from jax.experimental.pallas import tpu as pltpu


def _round_up(n, m):
    return ((n + m - 1) // m) * m


def _pick_tm(n_rows, tm_max=256):
    """Largest row tile (multiple of 8) that minimizes padding waste."""
    best_waste, best_tm = None, 8
    for t in (512, 256, 128, 64, 32, 16, 8):
        if t > tm_max:
            continue
        waste = _round_up(n_rows, t) - n_rows
        if best_waste is None or waste < best_waste:
            best_waste, best_tm = waste, t
    return best_tm


def generator_kernel(x_ref, w1_ref, w2_ref, o_ref, h_ref):
    # dropout1 / dropout2: eval-mode identity (see TODO at top of file).
    @pl.when(pl.program_id(1) == 0)
    def _():
        # Compute h = tanh(x @ w1) once per row tile; reuse for all vocab tiles.
        x = x_ref[...].astype(w1_ref.dtype)           # in-kernel bf16 cast (VPU)
        h = jnp.tanh(jnp.dot(x, w1_ref[...],
                             preferred_element_type=jnp.float32))  # f32 tanh (EUP)
        h_ref[...] = h.astype(h_ref.dtype)             # cache as bf16 in VMEM

    # sm_fc2 (no bias): bf16 operands, f32 MXU accumulation, cast to out dtype.
    o_ref[...] = jnp.dot(h_ref[...], w2_ref[...],
                         preferred_element_type=jnp.float32).astype(o_ref.dtype)


def prepare_generator_params(w1, w2, compute_dtype=jnp.bfloat16):
    """One-time weight prep (do at parameter-load time, NOT per forward call).

    PyTorch nn.Linear stores weights as (out_features, in_features); the kernel
    wants (in_features, out_features), bf16, with l1_out zero-padded to a
    multiple of 128 and vocab zero-padded to a lane-dense multiple.
    Returns (w1_t, w2_t, vocab) where vocab is the ORIGINAL output size.
    """
    l1_out, in_dim = w1.shape
    vocab, l1_out2 = w2.shape
    assert l1_out2 == l1_out

    l1_pad = _round_up(l1_out, 128)
    vocab_align = 128 if vocab <= 512 else 512        # enable tn=512 at real vocabs
    vocab_pad = _round_up(vocab, vocab_align)

    w1_t = jnp.asarray(w1).T.astype(compute_dtype)    # (in_dim, l1_out)
    w2_t = jnp.asarray(w2).T.astype(compute_dtype)    # (l1_out, vocab)
    if l1_pad != l1_out:
        w1_t = jnp.pad(w1_t, ((0, 0), (0, l1_pad - l1_out)))
        w2_t = jnp.pad(w2_t, ((0, l1_pad - l1_out), (0, 0)))
    if vocab_pad != vocab:
        w2_t = jnp.pad(w2_t, ((0, 0), (0, vocab_pad - vocab)))
    return w1_t, w2_t, vocab


def generator_forward(x, w1_t, w2_t, vocab=None, *, tn=512, tm_max=256,
                      out_dtype=None):
    """x: (B, S, 2H) any float dtype. w1_t: (2H, 3H_pad), w2_t: (3H_pad, V_pad)."""
    B, S, in_dim = x.shape
    in_dim_w, l1_pad = w1_t.shape
    l1_pad_w, vocab_pad = w2_t.shape
    assert in_dim_w == in_dim and l1_pad_w == l1_pad
    if vocab is None:
        vocab = vocab_pad
    if out_dtype is None:
        out_dtype = x.dtype                           # bf16 here halves the
                                                      # output HBM stream if the
                                                      # consumer tolerates it.

    # ---- Row tiling: pick tm minimizing padding, pad rows only if needed. ----
    N = B * S
    tm = _pick_tm(N, tm_max)
    n_pad = _round_up(N, tm)
    x2d = x.reshape(N, in_dim)                        # no dtype cast here
    if n_pad != N:
        x2d = jnp.pad(x2d, ((0, n_pad - N), (0, 0)))

    # ---- Vocab tiling: largest lane-dense tile dividing padded V. ----
    tn_candidates = [t for t in (tn, 512, 256, 128)
                     if t <= vocab_pad and vocab_pad % t == 0]
    tn_eff = max(tn_candidates) if tn_candidates else vocab_pad

    # ---- Crude VMEM accounting; shrink tn / raise scoped limit as needed. ----
    x_bytes = jnp.dtype(x.dtype).itemsize
    o_bytes = jnp.dtype(out_dtype).itemsize

    def vmem_estimate(t_n):
        return (in_dim * l1_pad * 2                   # resident w1 (1 buffer)
                + 2 * l1_pad * t_n * 2                # w2 tile, double-buffered
                + 2 * tm * in_dim * x_bytes           # x tile, double-buffered
                + 2 * tm * t_n * o_bytes              # out tile, double-buffered
                + tm * l1_pad * 2)                    # h scratch (bf16)

    budget = 40 << 20                                 # conservative across gens
    while vmem_estimate(tn_eff) > budget and tn_eff > 128 and tn_eff % 2 == 0:
        tn_eff //= 2

    compiler_kwargs = dict(
        # Rows are independent -> megacore / dual-TC sharding on v7x.
        # Vocab axis must be "arbitrary": the h scratch persists across it.
        dimension_semantics=("parallel", "arbitrary"),
    )
    est = vmem_estimate(tn_eff)
    if est > (12 << 20):                              # above the smallest default
        compiler_kwargs["vmem_limit_bytes"] = min(int(est * 1.5) + (2 << 20),
                                                  48 << 20)

    grid = (n_pad // tm, vocab_pad // tn_eff)

    out2d = pl.pallas_call(
        generator_kernel,
        out_shape=jax.ShapeDtypeStruct((n_pad, vocab_pad), out_dtype),
        grid=grid,
        in_specs=[
            # Row tile of x (native dtype); feature axis is the full array dim.
            # Block index is constant across j -> fetched once per row tile.
            pl.BlockSpec((tm, in_dim), lambda i, j: (i, 0)),
            # w1: same block for every grid step -> single-buffered resident.
            pl.BlockSpec((in_dim, l1_pad), lambda i, j: (0, 0),
                         pipeline_mode=pl.Buffered(1)),
            # w2: vocab-tiled; block varies with j, keep default double buffer.
            pl.BlockSpec((l1_pad, tn_eff), lambda i, j: (0, j)),
        ],
        out_specs=pl.BlockSpec((tm, tn_eff), lambda i, j: (i, j)),
        scratch_shapes=[pltpu.VMEM((tm, l1_pad), jnp.bfloat16)],   # h cache
        compiler_params=pltpu.CompilerParams(**compiler_kwargs),
    )(x2d, w1_t, w2_t)

    return out2d[:N, :vocab].reshape(B, S, vocab)


if __name__ == "__main__":
    # Shapes implied by the module: hidden_size=32 -> in=2*32=64,
    # l1_out=3*32=96, trg_vocab=128; batch=2, seq=8.
    hidden_size = 32
    trg_vocab = 128
    B, S = 2, 8
    in_dim = 2 * hidden_size
    l1_out = 3 * hidden_size

    key = jax.random.PRNGKey(0)
    kx, k1, k2 = jax.random.split(key, 3)

    x = jax.random.normal(kx, (B, S, in_dim), dtype=jnp.float32)
    # PyTorch Linear weight layout: (out_features, in_features).
    w1 = (jax.random.normal(k1, (l1_out, in_dim), dtype=jnp.float32)
          / jnp.sqrt(in_dim))
    w2 = (jax.random.normal(k2, (trg_vocab, l1_out), dtype=jnp.float32)
          / jnp.sqrt(l1_out))

    # One-time weight prep (transpose + bf16 + zero-pad), then the fused kernel.
    w1_t, w2_t, vocab = prepare_generator_params(w1, w2)
    out = generator_forward(x, w1_t, w2_t, vocab)
    out = jax.block_until_ready(out)
    assert out.shape == (B, S, trg_vocab)
    assert out.dtype == x.dtype

    # Reference 1: same bf16 operands + f32 accumulation (tight tolerance).
    # (Padding columns/rows are zeros -> bit-identical to unpadded math.)
    xb = x.reshape(B * S, in_dim).astype(jnp.bfloat16)
    w1b = w1.T.astype(jnp.bfloat16)
    w2b = w2.T.astype(jnp.bfloat16)
    hb = jnp.tanh(jnp.dot(xb, w1b, preferred_element_type=jnp.float32))
    ref_bf16 = jnp.dot(hb.astype(jnp.bfloat16), w2b,
                       preferred_element_type=jnp.float32
                       ).reshape(B, S, trg_vocab)
    assert jnp.allclose(out, ref_bf16, atol=2e-2, rtol=2e-2), (
        float(jnp.max(jnp.abs(out - ref_bf16))))

    # Reference 2: full f32 math (eval-mode dropout == identity); looser
    # tolerance accounts for bf16 MXU operands.
    ref_f32 = jnp.tanh(x @ w1.T) @ w2.T
    assert jnp.allclose(out, ref_f32, atol=1e-1, rtol=1e-1), (
        float(jnp.max(jnp.abs(out - ref_f32))))

    print("KERNEL_OK")
</pallas_src>

<mosaic_0001>
module attributes {stable_mosaic.version = 11 : i64} {
  func.func @generator_kernel(%arg0: i32, %arg1: i32, %arg2: memref<16x64xf32, #tpu.memory_space<vmem>>, %arg3: memref<64x128xbf16, #tpu.memory_space<vmem>>, %arg4: memref<128x128xbf16, #tpu.memory_space<vmem>>, %arg5: memref<16x128xf32, #tpu.memory_space<vmem>>, %arg6: memref<16x128xbf16, #tpu.memory_space<vmem>>) attributes {dimension_semantics = [#tpu.dimension_semantics<parallel>, #tpu.dimension_semantics<arbitrary>], iteration_bounds = array<i64: 1, 1>, scalar_prefetch = 0 : i64, scratch_operands = 1 : i64, tpu.core_type = #tpu.core_type<tc>, window_params = [{transform_indices = @transform_0, window_bounds = array<i64: 16, 64>}, {pipeline_mode = #tpu.pipeline_mode<synchronous>, transform_indices = @transform_1, window_bounds = array<i64: 64, 128>}, {transform_indices = @transform_2, window_bounds = array<i64: 128, 128>}, {transform_indices = @transform_3, window_bounds = array<i64: 16, 128>}]} {
    %c0_i32 = arith.constant 0 : i32
    %0 = arith.cmpi eq, %arg1, %c0_i32 : i32
    %1 = arith.extui %0 : i1 to i32
    %c0_i32_0 = arith.constant 0 : i32
    %2 = arith.cmpi ne, %1, %c0_i32_0 : i32
    scf.if %2 {
      %c0_6 = arith.constant 0 : index
      %c0_7 = arith.constant 0 : index
      %7 = vector.load %arg2[%c0_6, %c0_7] : memref<16x64xf32, #tpu.memory_space<vmem>>, vector<16x64xf32>
      %8 = arith.truncf %7 : vector<16x64xf32> to vector<16x64xbf16>
      %c0_8 = arith.constant 0 : index
      %c0_9 = arith.constant 0 : index
      %9 = vector.load %arg3[%c0_8, %c0_9] : memref<64x128xbf16, #tpu.memory_space<vmem>>, vector<64x128xbf16>
      %cst_10 = arith.constant dense<0.000000e+00> : vector<16x128xf32>
      %10 = tpu.matmul %8, %9, %cst_10 {dimension_numbers = #tpu.dot_dimension_numbers<[1], [0], [0], [1], [0, 0, 1, 1], [], []>} : vector<16x64xbf16>, vector<64x128xbf16>, vector<16x128xf32> -> vector<16x128xf32>
      %11 = math.tanh %10 : vector<16x128xf32>
      %12 = arith.truncf %11 : vector<16x128xf32> to vector<16x128xbf16>
      %c0_11 = arith.constant 0 : index
      %c0_12 = arith.constant 0 : index
      %13 = vector.load %arg6[%c0_11, %c0_12] : memref<16x128xbf16, #tpu.memory_space<vmem>>, vector<16x128xbf16>
      tpu.vector_store %arg6[%c0_11, %c0_12], %12 {strides = array<i32>} : memref<16x128xbf16, #tpu.memory_space<vmem>>, vector<16x128xbf16>,
    } else {
    }
    %c0 = arith.constant 0 : index
    %c0_1 = arith.constant 0 : index
    %3 = vector.load %arg6[%c0, %c0_1] : memref<16x128xbf16, #tpu.memory_space<vmem>>, vector<16x128xbf16>
    %c0_2 = arith.constant 0 : index
    %c0_3 = arith.constant 0 : index
    %4 = vector.load %arg4[%c0_2, %c0_3] : memref<128x128xbf16, #tpu.memory_space<vmem>>, vector<128x128xbf16>
    %cst = arith.constant dense<0.000000e+00> : vector<16x128xf32>
    %5 = tpu.matmul %3, %4, %cst {dimension_numbers = #tpu.dot_dimension_numbers<[1], [0], [0], [1], [0, 0, 1, 1], [], []>} : vector<16x128xbf16>, vector<128x128xbf16>, vector<16x128xf32> -> vector<16x128xf32>
    %c0_4 = arith.constant 0 : index
    %c0_5 = arith.constant 0 : index
    %6 = vector.load %arg5[%c0_4, %c0_5] : memref<16x128xf32, #tpu.memory_space<vmem>>, vector<16x128xf32>
    tpu.vector_store %arg5[%c0_4, %c0_5], %5 {strides = array<i32>} : memref<16x128xf32, #tpu.memory_space<vmem>>, vector<16x128xf32>,
    return
  }
  func.func @transform_0(%arg0: i32, %arg1: i32) -> (i32, i32) {
    %c0_i32 = arith.constant 0 : i32
    %c0_i32_0 = arith.constant 0 : i32
    return %arg0, %c0_i32 : i32, i32
  }
  func.func @transform_1(%arg0: i32, %arg1: i32) -> (i32, i32) {
    %c0_i32 = arith.constant 0 : i32
    %c0_i32_0 = arith.constant 0 : i32
    %c0_i32_1 = arith.constant 0 : i32
    return %c0_i32, %c0_i32_0 : i32, i32
  }
  func.func @transform_2(%arg0: i32, %arg1: i32) -> (i32, i32) {
    %c0_i32 = arith.constant 0 : i32
    %c0_i32_0 = arith.constant 0 : i32
    return %c0_i32, %arg1 : i32, i32
  }
  func.func @transform_3(%arg0: i32, %arg1: i32) -> (i32, i32) {
    %c0_i32 = arith.constant 0 : i32
    return %arg0, %arg1 : i32, i32
  }
}

</mosaic_0001>

<llo_original>
// kernel: tpu_custom_call.1
$region0: #{tpu_custom_call.1}
  #allocation0 [shape = 'u32[]', space=smem, size = 0x4, offset = 0x4, fixed_abs, tag = 'smem constant byte address 0x4 - core index']
  #allocation1 [shape = 'u32[72,128]{1,0:T(1,128)}', space=vmem, size = 0x9000, scoped, tag = 'internal scratch']
  #allocation2 [shape = 'bf16[16,128]{1,0:T(8,128)(2,1)}', space=vmem, size = 0x1000, scoped, tag = 'scratch operand']
  %s0 = inlined_call_operand.hbm [shape: f32[16,64], index: 0, kind: input, shape index: {}]
  %s1 = inlined_call_operand.hbm [shape: bf16[64,128], index: 1, kind: input, shape index: {}]
  %s2 = inlined_call_operand.hbm [shape: bf16[128,128], index: 2, kind: input, shape index: {}]
  %s3 = inlined_call_operand.hbm [shape: f32[16,128], index: 3, kind: output, shape index: {}]
  %s4 = sld [smem:[#allocation0]]
  $region38: #{tpu_custom_call.1} parent=0
    _
  %s6 = ssub.s32 1, %s4
  %s7 = scalar_select 0, %s6, %s4
  $region1: #{tpu_custom_call.1} parent=0
    #allocation3 [shape = 'u8[8192]{0}', space=vmem, size = 0x2000, scoped, tag = 'input window, operand 0, single buffered']
    #allocation4 [shape = 's32[1]{0}', space=sflag, size = 0x4, scoped, tag = 'scoped memory for tpu_custom_call.1']
    #allocation5 [shape = 's32[1]{0}', space=sflag, size = 0x4, scoped, tag = 'scoped memory for tpu_custom_call.1']
    #allocation6 [shape = 'u8[16384]{0}', space=vmem, size = 0x4000, scoped, tag = 'input window, operand 1, single buffered']
    #allocation7 [shape = 's32[1]{0}', space=sflag, size = 0x4, scoped, tag = 'scoped memory for tpu_custom_call.1']
    #allocation8 [shape = 'u8[32768]{0}', space=vmem, size = 0x8000, scoped, tag = 'input window, operand 2, single buffered']
    #allocation9 [shape = 'u8[8192]{0}', space=vmem, size = 0x2000, scoped, tag = 'output window, operand 0, single buffered']
    %8 = vsyncpa [#allocation4], 0
    %9 = vsyncpa [#allocation7], 0
    %10 = vsyncpa [#allocation5], 0
    // Predicated region
    $region2: #{tpu_custom_call.1} parent=1 // pred_check
      _
    $region3: #{tpu_custom_call.1} parent=1 // pred_check_branch
      %12 = sbr.rel (0) target = $region5
    $region4: #{tpu_custom_call.1} parent=1 // pred_region
      %14 = vsyncadd [#allocation4], 0
      %s15 = sshll.u32 %s0, 4
      %s16 = int_to_ptr.hbm [resolvable:$true] %s15
      %s17 = sshll.u32 [#allocation3], 4
      %s18 = int_to_ptr.vmem [resolvable:$true] %s17
      %23 = dma.hbm_to_vmem [thread:$0]  %s16, 256, %s18, [#allocation4], 128, 128, 8
    $region5: #{tpu_custom_call.1} parent=1 // pred_fallthru
      _
    // Predicated region
    $region6: #{tpu_custom_call.1} parent=1 // pred_check
      _
    $region7: #{tpu_custom_call.1} parent=1 // pred_check_branch
      %25 = sbr.rel (0) target = $region9
    $region8: #{tpu_custom_call.1} parent=1 // pred_region
      %27 = vsyncadd [#allocation7], 0
      %s28 = sshll.u32 %s1, 4
      %s29 = int_to_ptr.hbm [resolvable:$true] %s28
      %s30 = sshll.u32 [#allocation6], 4
      %s31 = int_to_ptr.vmem [resolvable:$true] %s30
      %36 = dma.hbm_to_vmem [thread:$0]  %s29, 512, %s31, [#allocation7], 64, 64, 4
    $region9: #{tpu_custom_call.1} parent=1 // pred_fallthru
      _
    // Predicated region
    $region10: #{tpu_custom_call.1} parent=1 // pred_check
      _
    $region11: #{tpu_custom_call.1} parent=1 // pred_check_branch
      %38 = sbr.rel (0) target = $region13
    $region12: #{tpu_custom_call.1} parent=1 // pred_region
      %40 = vsyncadd [#allocation7], 0
      %s41 = sshll.u32 %s2, 4
      %s42 = int_to_ptr.hbm [resolvable:$true] %s41
      %s43 = sshll.u32 [#allocation8], 4
      %s44 = int_to_ptr.vmem [resolvable:$true] %s43
      %49 = dma.hbm_to_vmem [thread:$0]  %s42, 1024, %s44, [#allocation7], 64, 64, 4
    $region13: #{tpu_custom_call.1} parent=1 // pred_fallthru
      _
    // Predicated region
    $region14: #{tpu_custom_call.1} parent=1 // pred_check
      _
    $region15: #{tpu_custom_call.1} parent=1 // pred_check_branch
      %51 = sbr.rel (0) target = $region17
    $region16: #{tpu_custom_call.1} parent=1 // pred_region
      %53 = dma.done [#allocation4], 256
    $region17: #{tpu_custom_call.1} parent=1 // pred_fallthru
      _
    // Predicated region
    $region18: #{tpu_custom_call.1} parent=1 // pred_check
      _
    $region19: #{tpu_custom_call.1} parent=1 // pred_check_branch
      %55 = sbr.rel (0) target = $region21
    $region20: #{tpu_custom_call.1} parent=1 // pred_region
      %57 = dma.done [#allocation7], 512
    $region21: #{tpu_custom_call.1} parent=1 // pred_fallthru
      _
    // Predicated region
    $region22: #{tpu_custom_call.1} parent=1 // pred_check
      _
    $region23: #{tpu_custom_call.1} parent=1 // pred_check_branch
      %59 = sbr.rel (0) target = $region25
    $region24: #{tpu_custom_call.1} parent=1 // pred_region
      %61 = dma.done [#allocation7], 1024
    $region25: #{tpu_custom_call.1} parent=1 // pred_fallthru
      _
    %p63 = scmp.eq.s32.totalorder 0, 0
    // Predicated region
    $region26: #{tpu_custom_call.1} parent=1 // pred_check
      %p64 = pneg %p63
    $region27: #{tpu_custom_call.1} parent=1 // pred_check_branch
      %66 = sbr.rel (%p64) target = $region29
    $region28: #{tpu_custom_call.1} parent=1 // pred_region
      %v67 = vld [vmem:[#allocation3] sm:$0xff]
      %v68 = vld [vmem:[#allocation3 + $0x8] sm:$0xff]
      %v69 = vpack.c.bf16 %v68, %v67
      %v70 = vld [vmem:[#allocation6] sm:$0xf]
      %v71 = vld [vmem:[#allocation6 + $0x4] sm:$0xf]
      %v72 = vld [vmem:[#allocation6 + $0x8] sm:$0xf]
      %v73 = vld [vmem:[#allocation6 + $0xc] sm:$0xf]
      %v74 = vld [vmem:[#allocation6 + $0x10] sm:$0xf]
      %v75 = vld [vmem:[#allocation6 + $0x14] sm:$0xf]
      %v76 = vld [vmem:[#allocation6 + $0x18] sm:$0xf]
      %v77 = vld [vmem:[#allocation6 + $0x1c] sm:$0xf]
      %v86 = vunpack.c.l.b16 %v70
      %v87 = vunpack.c.l.b16 %v71
      %v88 = vunpack.c.l.b16 %v72
      %v89 = vunpack.c.l.b16 %v73
      %v90 = vunpack.c.l.b16 %v74
      %v91 = vunpack.c.l.b16 %v75
      %v92 = vunpack.c.l.b16 %v76
      %v93 = vunpack.c.l.b16 %v77
      %v94 = vpack.c.b16 %v87, %v86
      %v95 = vpack.c.b16 %v89, %v88
      %v96 = vpack.c.b16 %v91, %v90
      %v97 = vpack.c.b16 %v93, %v92
      %vm102 = vcmask 523264
      %v104 = vsel %vm102, %v69, 0
      %106 = vmatpush.bf16.msra.mxu0 0
      %107 = vmatpush.bf16.msra.mxu0 0
      %108 = vmatpush.bf16.msra.mxu0 0
      %109 = vmatpush.bf16.msra.mxu0 0
      %110 = vmatpush.bf16.msra.mxu0 %v97
      %111 = vmatpush.bf16.msra.mxu0 %v96
      %112 = vmatpush.bf16.msra.mxu0 %v95
      %113 = vmatpush.bf16.msra.mxu0 %v94
      %114 = vmatmul.bf16.gmra.mxu0 %v104
      %v115 = vpop.f32.mrf.mxu0
      %v116 = vadd.f32 0.0, %v115
      %v117 = vpop.f32.mrf.mxu0
      %v118 = vadd.f32 0.0, %v117
      %119 = vdwg.mxu0
      %v120 = vtanh.pop %v116
      %v121 = vtanh.pop %v118
      %v122 = vpack.c.bf16 %v120, %v120
      %v123 = vpack.c.bf16 %v121, %v121
      %124 = vst [vmem:[#allocation2] sm:$0xf] %v122
      %125 = vst [vmem:[#allocation2 + $0x4] sm:$0xf] %v123
    $region29: #{tpu_custom_call.1} parent=1 // pred_fallthru
      _
    %v126 = vld [vmem:[#allocation2] sm:$0xf]
    %v127 = vld [vmem:[#allocation2 + $0x4] sm:$0xf]
    %v128 = vld [vmem:[#allocation8] sm:$0xf]
    %v129 = vld [vmem:[#allocation8 + $0x4] sm:$0xf]
    %v130 = vld [vmem:[#allocation8 + $0x8] sm:$0xf]
    %v131 = vld [vmem:[#allocation8 + $0xc] sm:$0xf]
    %v132 = vld [vmem:[#allocation8 + $0x10] sm:$0xf]
    %v133 = vld [vmem:[#allocation8 + $0x14] sm:$0xf]
    %v134 = vld [vmem:[#allocation8 + $0x18] sm:$0xf]
    %v135 = vld [vmem:[#allocation8 + $0x1c] sm:$0xf]
    %v136 = vld [vmem:[#allocation8 + $0x20] sm:$0xf]
    %v137 = vld [vmem:[#allocation8 + $0x24] sm:$0xf]
    %v138 = vld [vmem:[#allocation8 + $0x28] sm:$0xf]
    %v139 = vld [vmem:[#allocation8 + $0x2c] sm:$0xf]
    %v140 = vld [vmem:[#allocation8 + $0x30] sm:$0xf]
    %v141 = vld [vmem:[#allocation8 + $0x34] sm:$0xf]
    %v142 = vld [vmem:[#allocation8 + $0x38] sm:$0xf]
    %v143 = vld [vmem:[#allocation8 + $0x3c] sm:$0xf]
    %v146 = vunpack.c.l.b16 %v126
    %v147 = vunpack.c.l.b16 %v127
    %v148 = vpack.c.b16 %v147, %v146
    %v166 = vunpack.c.l.b16 %v128
    %v167 = vunpack.c.l.b16 %v129
    %v168 = vunpack.c.l.b16 %v130
    %v169 = vunpack.c.l.b16 %v131
    %v170 = vunpack.c.l.b16 %v132
    %v171 = vunpack.c.l.b16 %v133
    %v172 = vunpack.c.l.b16 %v134
    %v173 = vunpack.c.l.b16 %v135
    %v174 = vunpack.c.l.b16 %v136
    %v175 = vunpack.c.l.b16 %v137
    %v176 = vunpack.c.l.b16 %v138
    %v177 = vunpack.c.l.b16 %v139
    %v178 = vunpack.c.l.b16 %v140
    %v179 = vunpack.c.l.b16 %v141
    %v180 = vunpack.c.l.b16 %v142
    %v181 = vunpack.c.l.b16 %v143
    %v182 = vpack.c.b16 %v167, %v166
    %v183 = vpack.c.b16 %v169, %v168
    %v184 = vpack.c.b16 %v171, %v170
    %v185 = vpack.c.b16 %v173, %v172
    %v186 = vpack.c.b16 %v175, %v174
    %v187 = vpack.c.b16 %v177, %v176
    %v188 = vpack.c.b16 %v179, %v178
    %v189 = vpack.c.b16 %v181, %v180
    %198 = vmatpush.bf16.msra.mxu0 %v189
    %199 = vmatpush.bf16.msra.mxu0 %v188
    %200 = vmatpush.bf16.msra.mxu0 %v187
    %201 = vmatpush.bf16.msra.mxu0 %v186
    %202 = vmatpush.bf16.msra.mxu0 %v185
    %203 = vmatpush.bf16.msra.mxu0 %v184
    %204 = vmatpush.bf16.msra.mxu0 %v183
    %205 = vmatpush.bf16.msra.mxu0 %v182
    %206 = vmatmul.bf16.gmra.mxu0 %v148
    %v207 = vpop.f32.mrf.mxu0
    %v208 = vadd.f32 0.0, %v207
    %v209 = vpop.f32.mrf.mxu0
    %v210 = vadd.f32 0.0, %v209
    %211 = vdwg.mxu0
    %212 = vst [vmem:[#allocation9] sm:$0xff] %v208
    %213 = vst [vmem:[#allocation9 + $0x8] sm:$0xff] %v210
    // Predicated region
    $region30: #{tpu_custom_call.1} parent=1 // pred_check
      _
    $region31: #{tpu_custom_call.1} parent=1 // pred_check_branch
      %215 = sbr.rel (0) target = $region33
    $region32: #{tpu_custom_call.1} parent=1 // pred_region
      %217 = vsyncadd [#allocation5], 0
      %s218 = sshll.u32 [#allocation9], 4
      %s219 = int_to_ptr.vmem [resolvable:$true] %s218
      %s220 = sshll.u32 %s3, 4
      %s221 = int_to_ptr.hbm [resolvable:$true] %s220
      %226 = dma.vmem_to_hbm [thread:$0]  %s219, 256, %s221, [#allocation5], 128, 128, 8
    $region33: #{tpu_custom_call.1} parent=1 // pred_fallthru
      _
    // Predicated region
    $region34: #{tpu_custom_call.1} parent=1 // pred_check
      _
    $region35: #{tpu_custom_call.1} parent=1 // pred_check_branch
      %228 = sbr.rel (0) target = $region37
    $region36: #{tpu_custom_call.1} parent=1 // pred_region
      %230 = dma.done [#allocation5], 256
    $region37: #{tpu_custom_call.1} parent=1 // pred_fallthru
      _
    %231 = vsyncpa [#allocation4], 1
    %232 = vsyncpa [#allocation7], 1
    %233 = vsyncpa [#allocation5], 1

</llo_original>
